<compile_context>
chip_gen: v7x
topology: tpu7x:2x2x1
jax: 0.10.0
libtpu: 0.0.40
codegen_flags: <defaults>
</compile_context>

<pallas_src>
import functools

import jax
import jax.numpy as jnp
from jax.experimental import pallas as pl
from jax.experimental.pallas import tpu as pltpu


# ----------------------------------------------------------------------------
# Kernels
# ----------------------------------------------------------------------------
def _sinnet_resident_kernel(x_ref, w_in_ref, b_in_ref, w_out_ref, b_out_ref,
                            y_ref):
    """Grid = (n_tiles,).  Weights are VMEM-resident (constant index maps)."""
    # h = sin(x @ W_in_cat + b_in_cat)          -> [tn, K]   f32
    h = jnp.dot(x_ref[...], w_in_ref[...], preferred_element_type=jnp.float32)
    h = jnp.sin(h + b_in_ref[...])
    # y = h @ W_out_cat + b_out_sum             -> [tn, D_out] f32
    # h stays f32 (MXU has huge headroom; avoids bf16 round-off on sin output).
    y = jnp.dot(h, w_out_ref[...].astype(jnp.float32),
                preferred_element_type=jnp.float32)
    y_ref[...] = (y + b_out_ref[...]).astype(y_ref.dtype)


def _sinnet_ktiled_kernel(x_ref, w_in_ref, b_in_ref, w_out_ref, b_out_ref,
                          y_ref, acc_ref):
    """Grid = (n_tiles, k_tiles).  acc_ref is a resident f32 accumulator."""
    k = pl.program_id(1)

    @pl.when(k == 0)
    def _():
        acc_ref[...] = jnp.zeros_like(acc_ref)

    h = jnp.dot(x_ref[...], w_in_ref[...], preferred_element_type=jnp.float32)
    h = jnp.sin(h + b_in_ref[...])
    acc_ref[...] += jnp.dot(h, w_out_ref[...].astype(jnp.float32),
                            preferred_element_type=jnp.float32)

    @pl.when(k == pl.num_programs(1) - 1)
    def _():
        # Single writeback per N tile (bias added once).
        y_ref[...] = (acc_ref[...] + b_out_ref[...]).astype(y_ref.dtype)


# ----------------------------------------------------------------------------
# Tiling helpers
# ----------------------------------------------------------------------------
def _round_up(x, m):
    return ((x + m - 1) // m) * m


def _pick_batch_tile(n, want, quantum):
    """Batch tile: multiple of the packed-sublane quantum; prefer >= 2 tiles
    so both v7x TensorCores get work.  Ragged N is padded by the caller."""
    n_pad = _round_up(n, quantum)
    tn = min(_round_up(max(want, quantum), quantum), n_pad)
    if n_pad // tn < 2 and n_pad >= 2 * quantum:
        tn = _round_up(-(-n_pad // 2), quantum)
    return tn


def _pick_k_tile(K, want):
    """Largest tile <= want dividing K, preferring multiples of 256 (full MXU
    passes on v6e/v7x) then 128.  K is padded to a multiple of 128 at pack
    time, so the 128-quantum search always succeeds."""
    want = max(want, 128)
    if K <= want:
        return K
    for quantum in (256, 128):
        t = (want // quantum) * quantum
        while t >= quantum:
            if K % t == 0:
                return t
            t -= quantum
    return 128


def _ktiled_vmem_bytes(tn, tk, D_in, D_out, wbytes):
    """Rough per-step VMEM footprint of the K-tiled path (double-buffered)."""
    return (2 * (D_in * tk + tk * D_out) * wbytes   # W_in / W_out k-slabs
            + 2 * tk * 4                            # b_in k-slab (f32)
            + 2 * tn * D_in * wbytes                # x tile
            + 2 * tn * D_out * 4 + tn * D_out * 4   # y tile + acc scratch
            + tn * tk * 4)                          # h intermediate (f32)


# ----------------------------------------------------------------------------
# Parameter packing (call ONCE, outside the per-step path)
# ----------------------------------------------------------------------------
def pack_params(w_in_all, b_in_all, w_out_all, b_out_all,
                *, compute_dtype=jnp.bfloat16):
    """Fuse per-sub-network params into one concatenated sin-MLP.

    w_in_all:  [D_in, D_in, H]  (zero-padded per-sub-net input weights)
    b_in_all:  [D_in, H]
    w_out_all: [D_in, H, D_out]
    b_out_all: [D_in, D_out]
    Returns (w_in_cat [D_in,Kp], b_in_cat [1,Kp] f32,
             w_out_cat [Kp,D_out], b_out_sum [1,D_out] f32) with Kp = K
             padded to a multiple of 128 (zero pad columns/rows -> exact).
    """
    D_in, _, H = w_in_all.shape
    D_out = w_out_all.shape[-1]
    K = D_in * H
    K_pad = _round_up(K, 128)

    w_in_cat = jnp.transpose(w_in_all, (1, 0, 2)).reshape(D_in, K)
    b_in_cat = b_in_all.reshape(1, K).astype(jnp.float32)
    w_out_cat = w_out_all.reshape(K, D_out)
    b_out_sum = jnp.sum(b_out_all.astype(jnp.float32), axis=0, keepdims=True)

    if K_pad != K:
        w_in_cat = jnp.pad(w_in_cat, ((0, 0), (0, K_pad - K)))
        b_in_cat = jnp.pad(b_in_cat, ((0, 0), (0, K_pad - K)))
        w_out_cat = jnp.pad(w_out_cat, ((0, K_pad - K), (0, 0)))

    return (w_in_cat.astype(compute_dtype), b_in_cat,
            w_out_cat.astype(compute_dtype), b_out_sum)


# ----------------------------------------------------------------------------
# Forward pass
# ----------------------------------------------------------------------------
@functools.partial(jax.jit,
                   static_argnames=("block_n", "block_k", "vmem_budget_bytes"))
def multi_sinnet_fwd(x, w_in_cat, b_in_cat, w_out_cat, b_out_sum,
                     *, block_n=256, block_k=2048,
                     vmem_budget_bytes=28 << 20):
    """y = sin(x @ W_in_cat + b_in_cat) @ W_out_cat + b_out_sum.

    x: [N, D_in] f32.  Packed params come from pack_params() (done once).
    vmem_budget_bytes is a conservative cap (fits the default scoped VMEM on
    v5e/v6e/v7x); raise it on v5e/v6e if you also raise the scoped limit.
    """
    N, D_in = x.shape
    K = w_in_cat.shape[1]
    D_out = w_out_cat.shape[1]
    compute_dtype = w_in_cat.dtype
    wbytes = jnp.dtype(compute_dtype).itemsize

    x_c = x.astype(compute_dtype)

    # Batch tile: sublane quantum 8 (f32) / 16 (bf16) / 32 (int8).
    quantum = 8 * max(1, 4 // wbytes)
    tn = _pick_batch_tile(N, block_n, quantum)
    n_tiles = pl.cdiv(N, tn)
    n_pad = n_tiles * tn
    if n_pad != N:
        x_c = jnp.pad(x_c, ((0, n_pad - N), (0, 0)))

    # VMEM footprint of the K-untiled (resident-weight) path.
    resident_bytes = (
        2 * (D_in * K + K * D_out) * wbytes   # W_in_cat / W_out_cat buffers
        + 2 * K * 4 + 2 * D_out * 4           # biases (f32)
        + 2 * tn * D_in * wbytes              # x tile (double-buffered)
        + 2 * tn * D_out * 4                  # y tile (double-buffered)
        + tn * K * 4)                         # h intermediate (f32)

    if resident_bytes <= vmem_budget_bytes:
        # -------- fast path: weights resident in VMEM, no K reduction axis --
        y = pl.pallas_call(
            _sinnet_resident_kernel,
            out_shape=jax.ShapeDtypeStruct((n_pad, D_out), jnp.float32),
            grid_spec=pltpu.PrefetchScalarGridSpec(
                num_scalar_prefetch=0,
                grid=(n_tiles,),
                in_specs=[
                    pl.BlockSpec((tn, D_in), lambda n: (n, 0)),      # x
                    pl.BlockSpec((D_in, K), lambda n: (0, 0)),       # W_in  (resident)
                    pl.BlockSpec((1, K), lambda n: (0, 0)),          # b_in  (resident)
                    pl.BlockSpec((K, D_out), lambda n: (0, 0)),      # W_out (resident)
                    pl.BlockSpec((1, D_out), lambda n: (0, 0)),      # b_out (resident)
                ],
                out_specs=pl.BlockSpec((tn, D_out), lambda n: (n, 0)),
            ),
            compiler_params=pltpu.CompilerParams(
                dimension_semantics=("parallel",)),
        )(x_c, w_in_cat, b_in_cat, w_out_cat, b_out_sum)
    else:
        # -------- fallback: K-tiled reduction with f32 VMEM accumulator -----
        tk = _pick_k_tile(K, block_k)
        while tk > 128 and _ktiled_vmem_bytes(tn, tk, D_in, D_out,
                                              wbytes) > vmem_budget_bytes:
            tk = _pick_k_tile(K, max(tk // 2, 128))
        y = pl.pallas_call(
            _sinnet_ktiled_kernel,
            out_shape=jax.ShapeDtypeStruct((n_pad, D_out), jnp.float32),
            grid_spec=pltpu.PrefetchScalarGridSpec(
                num_scalar_prefetch=0,
                grid=(n_tiles, K // tk),
                in_specs=[
                    pl.BlockSpec((tn, D_in), lambda n, k: (n, 0)),   # x (resident over k)
                    pl.BlockSpec((D_in, tk), lambda n, k: (0, k)),   # W_in k-slab
                    pl.BlockSpec((1, tk), lambda n, k: (0, k)),      # b_in k-slab
                    pl.BlockSpec((tk, D_out), lambda n, k: (k, 0)),  # W_out k-slab
                    pl.BlockSpec((1, D_out), lambda n, k: (0, 0)),   # b_out
                ],
                out_specs=pl.BlockSpec((tn, D_out), lambda n, k: (n, 0)),
                scratch_shapes=[pltpu.VMEM((tn, D_out), jnp.float32)],
            ),
            compiler_params=pltpu.CompilerParams(
                dimension_semantics=("parallel", "arbitrary")),
        )(x_c, w_in_cat, b_in_cat, w_out_cat, b_out_sum)

    return y[:N] if n_pad != N else y


# ----------------------------------------------------------------------------
# Synthetic params + pure-JAX reference (for the self-test)
# ----------------------------------------------------------------------------
def init_params(key, D_in, H, D_out):
    """Deterministic synthetic params (PyTorch-Linear-style init).

    Sub-network i's true input weight is [i+1, H]; it is zero-padded to
    [D_in, H] so that x @ W_pad == x[:, :i+1] @ W_true.
    """
    w_in_list, b_in_list, w_out_list, b_out_list = [], [], [], []
    for i in range(D_in):
        key, k1, k2, k3, k4 = jax.random.split(key, 5)
        fan_in = i + 1
        bound_in = 1.0 / jnp.sqrt(fan_in)
        w_true = jax.random.uniform(k1, (fan_in, H), jnp.float32,
                                    -bound_in, bound_in)
        w_pad = jnp.zeros((D_in, H), jnp.float32).at[:fan_in, :].set(w_true)
        b_in = jax.random.uniform(k2, (H,), jnp.float32, -bound_in, bound_in)

        bound_out = 1.0 / jnp.sqrt(H)
        w_out = jax.random.uniform(k3, (H, D_out), jnp.float32,
                                   -bound_out, bound_out)
        b_out = jax.random.uniform(k4, (D_out,), jnp.float32,
                                   -bound_out, bound_out)

        w_in_list.append(w_pad)
        b_in_list.append(b_in)
        w_out_list.append(w_out)
        b_out_list.append(b_out)

    return (jnp.stack(w_in_list),   # [D_in, D_in, H]
            jnp.stack(b_in_list),   # [D_in, H]
            jnp.stack(w_out_list),  # [D_in, H, D_out]
            jnp.stack(b_out_list))  # [D_in, D_out]


def multi_sinnet_ref(x, w_in_all, b_in_all, w_out_all, b_out_all):
    """Pure-JAX f32 reference matching the PyTorch forward loop."""
    N = x.shape[0]
    D_in = w_in_all.shape[0]
    D_out = w_out_all.shape[-1]
    y = jnp.zeros((N, D_out), jnp.float32)
    for i in range(D_in):
        h = jnp.sin(x @ w_in_all[i] + b_in_all[i])
        y = y + (h @ w_out_all[i] + b_out_all[i])
    return y


if __name__ == "__main__":
    # Small shapes: batch N=16, D_in=4 features, hidden H=64, D_out=8.
    # K = D_in*H = 256 (already a multiple of 128).
    N, D_in, H, D_out = 16, 4, 64, 8
    key = jax.random.PRNGKey(0)
    key, kx = jax.random.split(key)
    x = jax.random.normal(kx, (N, D_in), jnp.float32)

    w_in_all, b_in_all, w_out_all, b_out_all = init_params(key, D_in, H, D_out)
    y_ref = multi_sinnet_ref(x, w_in_all, b_in_all, w_out_all, b_out_all)

    # (1) f32 compute, resident-weight (K-untiled) path: tight check.
    packed_f32 = pack_params(w_in_all, b_in_all, w_out_all, b_out_all,
                             compute_dtype=jnp.float32)
    y_f32 = jax.block_until_ready(multi_sinnet_fwd(x, *packed_f32))
    assert y_f32.shape == (N, D_out)
    assert y_f32.dtype == jnp.float32
    assert jnp.allclose(y_f32, y_ref, atol=1e-4, rtol=1e-4), \
        "f32 resident-path mismatch vs reference"

    # (2) f32 compute, forced K-tiled accumulator path (tiny VMEM budget so the
    #     fallback is exercised; tk shrinks to 128 -> 2 reduction steps).
    y_f32_kt = jax.block_until_ready(
        multi_sinnet_fwd(x, *packed_f32, block_k=128, vmem_budget_bytes=1))
    assert jnp.allclose(y_f32_kt, y_ref, atol=1e-4, rtol=1e-4), \
        "f32 K-tiled-path mismatch vs reference"

    # (3) bf16 fast path (resident weights, f32 sin + f32 second-dot LHS):
    #     loose check appropriate for bf16 operands.
    packed_bf16 = pack_params(w_in_all, b_in_all, w_out_all, b_out_all,
                              compute_dtype=jnp.bfloat16)
    y_bf16 = jax.block_until_ready(multi_sinnet_fwd(x, *packed_bf16))
    assert jnp.allclose(y_bf16, y_ref, atol=1e-1, rtol=1e-1), \
        "bf16 mismatch vs reference"

    print("KERNEL_OK")
</pallas_src>

<mosaic_0001>
module attributes {stable_mosaic.version = 11 : i64} {
  func.func @_sinnet_resident_kernel(%arg0: i32, %arg1: memref<8x4xf32, #tpu.memory_space<vmem>>, %arg2: memref<4x256xf32, #tpu.memory_space<vmem>>, %arg3: memref<1x256xf32, #tpu.memory_space<vmem>>, %arg4: memref<256x8xf32, #tpu.memory_space<vmem>>, %arg5: memref<1x8xf32, #tpu.memory_space<vmem>>, %arg6: memref<8x8xf32, #tpu.memory_space<vmem>>) attributes {dimension_semantics = [#tpu.dimension_semantics<parallel>], iteration_bounds = array<i64: 2>, scalar_prefetch = 0 : i64, scratch_operands = 0 : i64, tpu.core_type = #tpu.core_type<tc>, window_params = [{transform_indices = @transform_0, window_bounds = array<i64: 8, 4>}, {pipeline_mode = #tpu.pipeline_mode<synchronous>, transform_indices = @transform_1, window_bounds = array<i64: 4, 256>}, {pipeline_mode = #tpu.pipeline_mode<synchronous>, transform_indices = @transform_2, window_bounds = array<i64: 1, 256>}, {pipeline_mode = #tpu.pipeline_mode<synchronous>, transform_indices = @transform_3, window_bounds = array<i64: 256, 8>}, {pipeline_mode = #tpu.pipeline_mode<synchronous>, transform_indices = @transform_4, window_bounds = array<i64: 1, 8>}, {transform_indices = @transform_5, window_bounds = array<i64: 8, 8>}]} {
    %c0 = arith.constant 0 : index
    %c0_0 = arith.constant 0 : index
    %0 = vector.load %arg1[%c0, %c0_0] : memref<8x4xf32, #tpu.memory_space<vmem>>, vector<8x4xf32>
    %c0_1 = arith.constant 0 : index
    %c0_2 = arith.constant 0 : index
    %1 = vector.load %arg2[%c0_1, %c0_2] : memref<4x256xf32, #tpu.memory_space<vmem>>, vector<4x256xf32>
    %cst = arith.constant dense<0.000000e+00> : vector<8x256xf32>
    %2 = tpu.matmul %0, %1, %cst {dimension_numbers = #tpu.dot_dimension_numbers<[1], [0], [0], [1], [0, 0, 1, 1], [], []>} : vector<8x4xf32>, vector<4x256xf32>, vector<8x256xf32> -> vector<8x256xf32>
    %c0_3 = arith.constant 0 : index
    %c0_4 = arith.constant 0 : index
    %3 = vector.load %arg3[%c0_3, %c0_4] : memref<1x256xf32, #tpu.memory_space<vmem>>, vector<1x256xf32>
    %4 = vector.broadcast %3 : vector<1x256xf32> to vector<8x256xf32>
    %5 = arith.addf %2, %4 : vector<8x256xf32>
    %6 = math.sin %5 : vector<8x256xf32>
    %c0_5 = arith.constant 0 : index
    %c0_6 = arith.constant 0 : index
    %7 = vector.load %arg4[%c0_5, %c0_6] : memref<256x8xf32, #tpu.memory_space<vmem>>, vector<256x8xf32>
    %cst_7 = arith.constant dense<0.000000e+00> : vector<8x8xf32>
    %8 = tpu.matmul %6, %7, %cst_7 {dimension_numbers = #tpu.dot_dimension_numbers<[1], [0], [0], [1], [0, 0, 1, 1], [], []>} : vector<8x256xf32>, vector<256x8xf32>, vector<8x8xf32> -> vector<8x8xf32>
    %c0_8 = arith.constant 0 : index
    %c0_9 = arith.constant 0 : index
    %9 = vector.load %arg5[%c0_8, %c0_9] : memref<1x8xf32, #tpu.memory_space<vmem>>, vector<1x8xf32>
    %10 = vector.broadcast %9 : vector<1x8xf32> to vector<8x8xf32>
    %11 = arith.addf %8, %10 : vector<8x8xf32>
    %c0_10 = arith.constant 0 : index
    %c0_11 = arith.constant 0 : index
    %12 = vector.load %arg6[%c0_10, %c0_11] : memref<8x8xf32, #tpu.memory_space<vmem>>, vector<8x8xf32>
    tpu.vector_store %arg6[%c0_10, %c0_11], %11 {strides = array<i32>} : memref<8x8xf32, #tpu.memory_space<vmem>>, vector<8x8xf32>,
    return
  }
  func.func @transform_0(%arg0: i32) -> (i32, i32) {
    %c0_i32 = arith.constant 0 : i32
    %c0_i32_0 = arith.constant 0 : i32
    return %arg0, %c0_i32 : i32, i32
  }
  func.func @transform_1(%arg0: i32) -> (i32, i32) {
    %c0_i32 = arith.constant 0 : i32
    %c0_i32_0 = arith.constant 0 : i32
    %c0_i32_1 = arith.constant 0 : i32
    return %c0_i32, %c0_i32_0 : i32, i32
  }
  func.func @transform_2(%arg0: i32) -> (i32, i32) {
    %c0_i32 = arith.constant 0 : i32
    %c0_i32_0 = arith.constant 0 : i32
    %c0_i32_1 = arith.constant 0 : i32
    return %c0_i32, %c0_i32_0 : i32, i32
  }
  func.func @transform_3(%arg0: i32) -> (i32, i32) {
    %c0_i32 = arith.constant 0 : i32
    %c0_i32_0 = arith.constant 0 : i32
    %c0_i32_1 = arith.constant 0 : i32
    return %c0_i32, %c0_i32_0 : i32, i32
  }
  func.func @transform_4(%arg0: i32) -> (i32, i32) {
    %c0_i32 = arith.constant 0 : i32
    %c0_i32_0 = arith.constant 0 : i32
    %c0_i32_1 = arith.constant 0 : i32
    return %c0_i32, %c0_i32_0 : i32, i32
  }
  func.func @transform_5(%arg0: i32) -> (i32, i32) {
    %c0_i32 = arith.constant 0 : i32
    %c0_i32_0 = arith.constant 0 : i32
    return %arg0, %c0_i32 : i32, i32
  }
}

</mosaic_0001>

<llo_original>
// kernel: multi_sinnet_fwd.1
$region0: #{multi_sinnet_fwd.1}
  #allocation0 [shape = 'u32[]', space=smem, size = 0x4, offset = 0x4, fixed_abs, tag = 'smem constant byte address 0x4 - core index']
  #allocation1 [shape = 'u32[144,128]{1,0:T(1,128)}', space=vmem, size = 0x12000, scoped, tag = 'internal scratch']
  %s0 = inlined_call_operand.vmem [shape: f32[16,4], index: 0, kind: input, shape index: {}]
  %s1 = inlined_call_operand.vmem [shape: f32[4,256], index: 1, kind: input, shape index: {}]
  %s2 = inlined_call_operand.vmem [shape: f32[1,256], index: 2, kind: input, shape index: {}]
  %s3 = inlined_call_operand.vmem [shape: f32[256,8], index: 3, kind: input, shape index: {}]
  %s4 = inlined_call_operand.vmem [shape: f32[1,8], index: 4, kind: input, shape index: {}]
  %s5 = inlined_call_operand.vmem [shape: f32[16,8], index: 5, kind: output, shape index: {}]
  %s6 = sld [smem:[#allocation0]]
  $region53: #{multi_sinnet_fwd.1} parent=0
    _
  %s8 = ssub.s32 1, %s6
  %s9 = scalar_select 0, %s8, %s6
  loop: start=0, step=1, limit=4
  $region2: #{multi_sinnet_fwd.1} parent=0 // loop_pre_header
    _
  $region3: #{multi_sinnet_fwd.1} parent=0 // loop_header
    %s11 = sphi 0, %s15
    %p12 = scmp.ge.s32.totalorder %s11, 4
    %s21 = sphi 0, %s23
    %s24 = sphi 0, %s21
    %s25 = sphi 0, %s24
    %s41 = sphi 0, %s25
    %s45 = sphi 0, %s45
    %s47 = sphi 0, %s45
    %s48 = sphi 0, %s47
    %s62 = sphi 0, %s48
    %s66 = sphi 0, %s66
    %s68 = sphi 0, %s66
    %s69 = sphi 0, %s68
    %s83 = sphi 0, %s69
    %s87 = sphi 0, %s87
    %s89 = sphi 0, %s87
    %s90 = sphi 0, %s89
    %s104 = sphi 0, %s90
    %s108 = sphi 0, %s108
    %s110 = sphi 0, %s108
    %s111 = sphi 0, %s110
    %s125 = sphi 0, %s111
    %s131 = sphi 0, %s133
    %s134 = sphi 0, %s131
    %s135 = sphi 0, %s134
    %s151 = sphi 0, %s135
  $region4: #{multi_sinnet_fwd.1} parent=0 // loop_header_branch
    %14 = sbr.rel (%p12) target = $region8
  $region5: #{multi_sinnet_fwd.1} parent=0 // loop_body
    %s16 = ssub.s32 %s11, 1
    %s17 = ssub.s32 %s11, 2
    %s18 = sadd.s32 %s11, 1
    %s19 = ssub.s32 %s11, %s18
    %p20 = scmp.eq.s32.totalorder %s19, 0
    %s22 = sadd.s32 %s21, 1
    %s23 = scalar_select %p20, %s21, %s22
    %p26 = pneg %p20
    %p27 = scmp.eq.s32.totalorder %s11, 1
    %p28 = por %p26, %p27
    %p29 = scmp.ne.s32.totalorder %s21, %s24
    %p30 = scmp.eq.s32.totalorder %s11, 0
    %p31 = por %p29, %p30
    %p32 = scmp.ne.s32.totalorder %s21, %s24
    %p33 = scmp.eq.s32.totalorder %s16, 1
    %p34 = por %p32, %p33
    %p35 = scmp.ne.s32.totalorder %s24, %s25
    %p36 = scmp.eq.s32.totalorder %s16, 0
    %p37 = por %p35, %p36
    %p38 = scmp.ne.s32.totalorder %s24, %s25
    %p39 = scmp.eq.s32.totalorder %s17, 1
    %p40 = por %p38, %p39
    %p42 = scmp.ne.s32.totalorder %s25, %s41
    %p43 = scmp.eq.s32.totalorder %s17, 0
    %p44 = por %p42, %p43
    %s46 = sadd.s32 %s45, 1
    %p49 = scmp.eq.s32.totalorder %s11, 1
    %p50 = scmp.ne.s32.totalorder %s45, %s47
    %p51 = scmp.eq.s32.totalorder %s11, 0
    %p52 = por %p50, %p51
    %p53 = scmp.ne.s32.totalorder %s45, %s47
    %p54 = scmp.eq.s32.totalorder %s16, 1
    %p55 = por %p53, %p54
    %p56 = scmp.ne.s32.totalorder %s47, %s48
    %p57 = scmp.eq.s32.totalorder %s16, 0
    %p58 = por %p56, %p57
    %p59 = scmp.ne.s32.totalorder %s47, %s48
    %p60 = scmp.eq.s32.totalorder %s17, 1
    %p61 = por %p59, %p60
    %p63 = scmp.ne.s32.totalorder %s48, %s62
    %p64 = scmp.eq.s32.totalorder %s17, 0
    %p65 = por %p63, %p64
    %s67 = sadd.s32 %s66, 1
    %p70 = scmp.eq.s32.totalorder %s11, 1
    %p71 = scmp.ne.s32.totalorder %s66, %s68
    %p72 = scmp.eq.s32.totalorder %s11, 0
    %p73 = por %p71, %p72
    %p74 = scmp.ne.s32.totalorder %s66, %s68
    %p75 = scmp.eq.s32.totalorder %s16, 1
    %p76 = por %p74, %p75
    %p77 = scmp.ne.s32.totalorder %s68, %s69
    %p78 = scmp.eq.s32.totalorder %s16, 0
    %p79 = por %p77, %p78
    %p80 = scmp.ne.s32.totalorder %s68, %s69
    %p81 = scmp.eq.s32.totalorder %s17, 1
    %p82 = por %p80, %p81
    %p84 = scmp.ne.s32.totalorder %s69, %s83
    %p85 = scmp.eq.s32.totalorder %s17, 0
    %p86 = por %p84, %p85
    %s88 = sadd.s32 %s87, 1
    %p91 = scmp.eq.s32.totalorder %s11, 1
    %p92 = scmp.ne.s32.totalorder %s87, %s89
    %p93 = scmp.eq.s32.totalorder %s11, 0
    %p94 = por %p92, %p93
    %p95 = scmp.ne.s32.totalorder %s87, %s89
    %p96 = scmp.eq.s32.totalorder %s16, 1
    %p97 = por %p95, %p96
    %p98 = scmp.ne.s32.totalorder %s89, %s90
    %p99 = scmp.eq.s32.totalorder %s16, 0
    %p100 = por %p98, %p99
    %p101 = scmp.ne.s32.totalorder %s89, %s90
    %p102 = scmp.eq.s32.totalorder %s17, 1
    %p103 = por %p101, %p102
    %p105 = scmp.ne.s32.totalorder %s90, %s104
    %p106 = scmp.eq.s32.totalorder %s17, 0
    %p107 = por %p105, %p106
    %s109 = sadd.s32 %s108, 1
    %p112 = scmp.eq.s32.totalorder %s11, 1
    %p113 = scmp.ne.s32.totalorder %s108, %s110
    %p114 = scmp.eq.s32.totalorder %s11, 0
    %p115 = por %p113, %p114
    %p116 = scmp.ne.s32.totalorder %s108, %s110
    %p117 = scmp.eq.s32.totalorder %s16, 1
    %p118 = por %p116, %p117
    %p119 = scmp.ne.s32.totalorder %s110, %s111
    %p120 = scmp.eq.s32.totalorder %s16, 0
    %p121 = por %p119, %p120
    %p122 = scmp.ne.s32.totalorder %s110, %s111
    %p123 = scmp.eq.s32.totalorder %s17, 1
    %p124 = por %p122, %p123
    %p126 = scmp.ne.s32.totalorder %s111, %s125
    %p127 = scmp.eq.s32.totalorder %s17, 0
    %p128 = por %p126, %p127
    %s129 = ssub.s32 %s11, %s18
    %p130 = scmp.eq.s32.totalorder %s129, 0
    %s132 = sadd.s32 %s131, 1
    %s133 = scalar_select %p130, %s131, %s132
    %p136 = pneg %p130
    %p137 = scmp.eq.s32.totalorder %s11, 1
    %p138 = por %p136, %p137
    %p139 = scmp.ne.s32.totalorder %s131, %s134
    %p140 = scmp.eq.s32.totalorder %s11, 0
    %p141 = por %p139, %p140
    %p142 = scmp.ne.s32.totalorder %s131, %s134
    %p143 = scmp.eq.s32.totalorder %s16, 1
    %p144 = por %p142, %p143
    %p145 = scmp.ne.s32.totalorder %s134, %s135
    %p146 = scmp.eq.s32.totalorder %s16, 0
    %p147 = por %p145, %p146
    %p148 = scmp.ne.s32.totalorder %s134, %s135
    %p149 = scmp.eq.s32.totalorder %s17, 1
    %p150 = por %p148, %p149
    %p152 = scmp.ne.s32.totalorder %s135, %s151
    %p153 = scmp.eq.s32.totalorder %s17, 0
    %p154 = por %p152, %p153
    %p155 = scmp.le.s32.totalorder 1, %s11
    %p156 = scmp.lt.s32.totalorder %s11, 3
    %p157 = pnand %p155, %p156
    %p158 = pneg %p157
    // Predicated region
    $region9: #{multi_sinnet_fwd.1} parent=5 // pred_check
      _
    $region10: #{multi_sinnet_fwd.1} parent=5 // pred_check_branch
      %160 = sbr.rel (%p157) target = $region12
    $region11: #{multi_sinnet_fwd.1} parent=5 // pred_region
      %s161 = ssub.s32 %s11, 1
      // Predicated region
      $region13: #{multi_sinnet_fwd.1} parent=11 // pred_check
        %p162 = pneg %p58
      $region14: #{multi_sinnet_fwd.1} parent=11 // pred_check_branch
        %164 = sbr.rel (%p162) target = $region16
      $region15: #{multi_sinnet_fwd.1} parent=11 // pred_region
        _
      $region16: #{multi_sinnet_fwd.1} parent=11 // pred_fallthru
        _
      // Predicated region
      $region17: #{multi_sinnet_fwd.1} parent=11 // pred_check
        %p165 = pneg %p79
      $region18: #{multi_sinnet_fwd.1} parent=11 // pred_check_branch
        %167 = sbr.rel (%p165) target = $region20
      $region19: #{multi_sinnet_fwd.1} parent=11 // pred_region
        _
      $region20: #{multi_sinnet_fwd.1} parent=11 // pred_fallthru
        _
      // Predicated region
      $region21: #{multi_sinnet_fwd.1} parent=11 // pred_check
        %p168 = pneg %p100
      $region22: #{multi_sinnet_fwd.1} parent=11 // pred_check_branch
        %170 = sbr.rel (%p168) target = $region24
      $region23: #{multi_sinnet_fwd.1} parent=11 // pred_region
        _
      $region24: #{multi_sinnet_fwd.1} parent=11 // pred_fallthru
        _
      // Predicated region
      $region25: #{multi_sinnet_fwd.1} parent=11 // pred_check
        %p171 = pneg %p121
      $region26: #{multi_sinnet_fwd.1} parent=11 // pred_check_branch
        %173 = sbr.rel (%p171) target = $region28
      $region27: #{multi_sinnet_fwd.1} parent=11 // pred_region
        _
      $region28: #{multi_sinnet_fwd.1} parent=11 // pred_fallthru
        _
    $region12: #{multi_sinnet_fwd.1} parent=5 // pred_fallthru
      _
    %p174 = scmp.lt.s32.totalorder %s11, 2
    // Predicated region
    $region29: #{multi_sinnet_fwd.1} parent=5 // pred_check
      %p175 = pneg %p174
    $region30: #{multi_sinnet_fwd.1} parent=5 // pred_check_branch
      %177 = sbr.rel (%p175) target = $region32
    $region31: #{multi_sinnet_fwd.1} parent=5 // pred_region
      // Predicated region
      $region33: #{multi_sinnet_fwd.1} parent=31 // pred_check
        %p178 = pneg %p31
      $region34: #{multi_sinnet_fwd.1} parent=31 // pred_check_branch
        %180 = sbr.rel (%p178) target = $region36
      $region35: #{multi_sinnet_fwd.1} parent=31 // pred_region
        %p181 = scmp.lt.s32.totalorder %s11, 1
        %s182 = scalar_select %p181, %s11, 1
        %s183 = smul.addr %s182, 8
        %s184 = scalar_lea.vmem %s0, %s183
      $region36: #{multi_sinnet_fwd.1} parent=31 // pred_fallthru
        _
    $region32: #{multi_sinnet_fwd.1} parent=5 // pred_fallthru
      _
    %p185 = scmp.le.s32.totalorder 1, %s11
    %p186 = scmp.lt.s32.totalorder %s11, 3
    %p187 = pnand %p185, %p186
    %p188 = pneg %p187
    // Predicated region
    $region37: #{multi_sinnet_fwd.1} parent=5 // pred_check
      _
    $region38: #{multi_sinnet_fwd.1} parent=5 // pred_check_branch
      %190 = sbr.rel (%p187) target = $region40
    $region39: #{multi_sinnet_fwd.1} parent=5 // pred_region
      %s191 = ssub.s32 %s11, 1
      %p192 = scmp.lt.s32.totalorder %s16, 1
      %s193 = scalar_select %p192, %s16, 1
      %s194 = smul.addr %s193, 8
      %s195 = scalar_lea.vmem %s0, %s194
      %p196 = pneg %p37
      %p197 = pneg %p34
      %p198 = pneg %p58
      %p199 = pneg %p55
      %p200 = pneg %p79
      %p201 = pneg %p76
      %p202 = pneg %p100
      %p203 = pneg %p97
      %p204 = pneg %p121
      %p205 = pneg %p118
      %p206 = pneg %p147
      %p207 = pneg %p144
      %p208 = scmp.lt.s32.totalorder %s16, 1
      %s209 = scalar_select %p208, %s16, 1
      %s210 = smul.addr %s209, 8
      %s211 = scalar_lea.vmem %s5, %s210
      %p212 = scmp.lt.s32.totalorder %s16, 1
      %s213 = scalar_select %p212, %s16, 1
      %s214 = smul.addr %s213, 8
      %s215 = scalar_lea.vmem %s0, %s214
      %p216 = scmp.lt.s32.totalorder %s16, 1
      %s217 = scalar_select %p216, %s16, 1
      %s218 = smul.addr %s217, 8
      %s219 = scalar_lea.vmem %s5, %s218
      %v220 = vld [vmem:[%s215] sm:$0xff]
      %v221 = vld [vmem:[%s1] sm:$0xff]
      %v222 = vld [vmem:[%s2] sm:$0x3]
      %v224 = vlaneseq
      %v225 = vshrl.u32 %v224, 7
      %v226 = vsub.s32 0, %v225
      %v227 = vrot.slane %v222, %v226
      %v228 = vlaneseq
      %v229 = vshrl.u32 %v228, 7
      %v230 = vsub.s32 1, %v229
      %v231 = vrot.slane %v222, %v230
      %v235 = vcombine.high %v221, %v221
      %vm236 = vcmask 31744
      %v238 = vsel %vm236, %v220, 0
      %vm240 = vcmask 1043456
      %v241 = vsel %vm240, %v221, 0
      %v243 = vsel %vm240, %v235, 0
      %245 = vmatprep.subr.mxu0 %v243
      %246 = vmatpush1.msra.mxu0 %v241
      %247 = vmatprep.subr.mxu0 0.0
      %248 = vmatpush1.msra.mxu0 0.0
      %249 = vmatprep.subr.mxu0 0.0
      %250 = vmatpush1.msra.mxu0 0.0
      %251 = vmatprep.subr.mxu0 0.0
      %252 = vmatpush1.msra.mxu0 0.0
      %253 = vmatprep.subr.mxu0 0.0
      %254 = vmatpush1.msra.mxu0 0.0
      %255 = vmatprep.subr.mxu0 0.0
      %256 = vmatpush1.msra.mxu0 0.0
      %257 = vmatprep.subr.mxu0 0.0
      %258 = vmatpush1.msra.mxu0 0.0
      %259 = vmatprep.subr.mxu0 0.0
      %260 = vmatpush1.msra.mxu0 0.0
      %261 = vmatprep.subr.mxu0 0.0
      %262 = vmatpush1.msra.mxu0 0.0
      %263 = vmatprep.subr.mxu0 0.0
      %264 = vmatpush1.msra.mxu0 0.0
      %265 = vmatprep.subr.mxu0 0.0
      %266 = vmatpush1.msra.mxu0 0.0
      %267 = vmatprep.subr.mxu0 0.0
      %268 = vmatpush1.msra.mxu0 0.0
      %269 = vmatprep.subr.mxu0 0.0
      %270 = vmatpush1.msra.mxu0 0.0
      %271 = vmatprep.subr.mxu0 0.0
      %272 = vmatpush1.msra.mxu0 0.0
      %273 = vmatprep.subr.mxu0 0.0
      %274 = vmatpush1.msra.mxu0 0.0
      %275 = vmatprep.subr.mxu0 0.0
      %276 = vmatpush1.msra.mxu0 0.0
      %277 = vmatprep.subr.mxu0 0.0
      %278 = vmatpush1.msra.mxu0 0.0
      %279 = vmatprep.subr.mxu0 0.0
      %280 = vmatpush1.msra.mxu0 0.0
      %281 = vmatprep.subr.mxu0 0.0
      %282 = vmatpush1.msra.mxu0 0.0
      %283 = vmatprep.subr.mxu0 0.0
      %284 = vmatpush1.msra.mxu0 0.0
      %285 = vmatprep.subr.mxu0 0.0
      %286 = vmatpush1.msra.mxu0 0.0
      %287 = vmatprep.subr.mxu0 0.0
      %288 = vmatpush1.msra.mxu0 0.0
      %289 = vmatprep.subr.mxu0 0.0
      %290 = vmatpush1.msra.mxu0 0.0
      %291 = vmatprep.subr.mxu0 0.0
      %292 = vmatpush1.msra.mxu0 0.0
      %293 = vmatprep.subr.mxu0 0.0
      %294 = vmatpush1.msra.mxu0 0.0
      %295 = vmatprep.subr.mxu0 0.0
      %296 = vmatpush1.msra.mxu0 0.0
      %297 = vmatprep.subr.mxu0 0.0
      %298 = vmatpush1.msra.mxu0 0.0
      %299 = vmatprep.subr.mxu0 0.0
      %300 = vmatpush1.msra.mxu0 0.0
      %301 = vmatprep.subr.mxu0 0.0
      %302 = vmatpush1.msra.mxu0 0.0
      %303 = vmatprep.subr.mxu0 0.0
      %304 = vmatpush1.msra.mxu0 0.0
      %305 = vmatprep.subr.mxu0 0.0
      %306 = vmatpush1.msra.mxu0 0.0
      %307 = vmatprep.subr.mxu0 0.0
      %308 = vmatpush1.msra.mxu0 0.0
      %309 = vmatprep.mubr.f32.mxu0 0.0
      %310 = vmatmul.mubr.f32.gmra.mrb[0].mxu0 %v238
      %v311 = vpop.f32.mrb[0].mxu0
      %v312 = vadd.f32 %v227, %v311
      %v313 = vpop.f32.mrb[0].mxu0
      %v314 = vadd.f32 %v231, %v313
      %315 = vdwg.mxu0
      %v316 = vand.u32 2147483647, %v312
      %vm317 = vcmp.le.f32.partialorder %v316, 0.7853982
      %vm318 = vcmp.lt.s32.totalorder %v312, 0
      %v319 = vand.u32 %v312, 2139095040
      %v320 = vshrl.u32 %v319, 23
      %v321 = vsub.s32 %v320, 127
      %v322 = vand.u32 2147483647, %v312
      %v323 = vand.u32 %v322, 8388607
      %v324 = vor.u32 %v323, 8388608
      %v325 = vsub.s32 0, %v324
      %v326 = vadd.s32 %v321, 1
      %vm327 = vcmp.gt.s32.totalorder %v326, 0
      %v328 = vsel %vm327, %v326, 0
      %v329 = vshrl.u32 %v328, 5
      %v330 = vand.u32 %v328, 31
      %v331 = vsub.s32 32, %v330
      %v332 = vshrl.u32 683565275, %v331
      %v333 = vshll.u32 683565275, %v330
      %v334 = vshrl.u32 2475754826, %v331
      %v335 = vor.u32 %v333, %v334
      %v336 = vshll.u32 2475754826, %v330
      %v337 = vshrl.u32 2131351028, %v331
      %v338 = vor.u32 %v336, %v337
      %v339 = vshll.u32 2131351028, %v330
      %v340 = vshrl.u32 2102212464, %v331
      %v341 = vor.u32 %v339, %v340
      %v342 = vshll.u32 2102212464, %v330
      %v343 = vshrl.u32 920167782, %v331
      %v344 = vor.u32 %v342, %v343
      %v345 = vshll.u32 920167782, %v330
      %v346 = vshrl.u32 1326507024, %v331
      %v347 = vor.u32 %v345, %v346
      %vm348 = vcmp.lt.s32.totalorder %v329, 1
      %vm349 = vcmp.lt.s32.totalorder %v329, 2
      %vm350 = vcmp.lt.s32.totalorder %v329, 3
      %vm351 = vcmp.lt.s32.totalorder %v329, 4
      %v352 = vsel %vm348, %v332, %v335
      %v353 = vsel %vm351, %v341, 2102212464
      %v354 = vsel %vm350, %v338, %v353
      %v355 = vsel %vm349, %v352, %v354
      %v356 = vsel %vm348, %v335, %v338
      %v357 = vsel %vm351, %v344, 920167782
      %v358 = vsel %vm350, %v341, %v357
      %v359 = vsel %vm349, %v356, %v358
      %v360 = vsel %vm348, %v338, %v341
      %v361 = vsel %vm351, %v347, 1326507024
      %v362 = vsel %vm350, %v344, %v361
      %v363 = vsel %vm349, %v360, %v362
      %v364 = vshll.u32 %v324, 8
      %v365 = vmul.u32.u64.compose %v364, %v363
      %v366 = vextract.low.u32 %v365
      %v367 = vextract.high.u32 %v365
      %v368 = vmul.u32.u64.compose %v364, %v359
      %v369 = vextract.low.u32 %v368
      %v370 = vextract.high.u32 %v368
      %v371 = vmul.u32 %v364, %v355
      %v372 = vadd.s32 %v367, %v369
      %vm373 = vc.u32 %v367, %v369
      %v374 = vadd.s32 %v370, 1
      %v375 = vsel %vm373, %v374, %v370
      %v376 = vadd.s32 %v371, %v375
      %v377 = vadd.s32 %v376, 536870912
      %v378 = vshrl.u32 %v377, 30
      %v379 = vshll.u32 %v378, 30
      %v380 = vsub.s32 %v376, %v379
      %vm381 = vcmp.lt.s32.totalorder %v380, 0
      %v382 = vsub.s32 0, %v380
      %v383 = vsel %vm381, %v382, %v380
      %v384 = vclz %v383
      %v385 = vsub.s32 %v384, 2
      %vm386 = vcmp.gt.s32.totalorder 0, %v385
      %v387 = vsel %vm386, 0, %v385
      %v388 = vsub.s32 32, %v387
      %v389 = vshll.u32 %v380, %v387
      %v390 = vshrl.u32 %v372, %v388
      %v391 = vor.u32 %v389, %v390
      %v392 = vsub.s32 4294967266, %v387
      %v393 = vadd.s32 %v392, 127
      %v394 = vshll.u32 %v393, 23
      %v395 = vor.u32 4788187, %v394
      %v396 = vand.u32 2147483647, %v395
      %v398 = vcvt.s32.f32 %v391
      %v399 = vmul.f32 %v398, %v396
      %v400 = vxor.u32 %v399, 2147483648
      %v401 = vsel %vm318, %v400, %v399
      %v402 = vsub.s32 4, %v378
      %v403 = vsel %vm318, %v402, %v378
      %v404 = vsel %vm317, %v312, %v401
      %v405 = vsel %vm317, 0, %v403
      %v406 = vcosq.f32.pop %v404
      %v407 = vsinq.f32.pop %v404
      %vm408 = vweird.f32 %v312
      %v409 = vadd.s32 %v405, 3
      %v410 = vand.u32 %v409, 3
      %vm411 = vcmp.lt.s32.totalorder %v410, 2
      %vm412 = vcmp.eq.s32.totalorder %v410, 0
      %v413 = vxor.u32 %v407, 2147483648
      %v414 = vsel %vm412, %v406, %v413
      %vm415 = vcmp.eq.s32.totalorder %v410, 2
      %v416 = vxor.u32 %v406, 2147483648
      %v417 = vsel %vm415, %v416, %v407
      %v418 = vsel %vm411, %v414, %v417
      %v419 = vsel %vm408, nan, %v418
      %v420 = vand.u32 2147483647, %v314
      %vm421 = vcmp.le.f32.partialorder %v420, 0.7853982
      %vm422 = vcmp.lt.s32.totalorder %v314, 0
      %v423 = vand.u32 %v314, 2139095040
      %v424 = vshrl.u32 %v423, 23
      %v425 = vsub.s32 %v424, 127
      %v426 = vand.u32 2147483647, %v314
      %v427 = vand.u32 %v426, 8388607
      %v428 = vor.u32 %v427, 8388608
      %v429 = vsub.s32 0, %v428
      %v430 = vadd.s32 %v425, 1
      %vm431 = vcmp.gt.s32.totalorder %v430, 0
      %v432 = vsel %vm431, %v430, 0
      %v433 = vshrl.u32 %v432, 5
      %v434 = vand.u32 %v432, 31
      %v435 = vsub.s32 32, %v434
      %v436 = vshrl.u32 683565275, %v435
      %v437 = vshll.u32 683565275, %v434
      %v438 = vshrl.u32 2475754826, %v435
      %v439 = vor.u32 %v437, %v438
      %v440 = vshll.u32 2475754826, %v434
      %v441 = vshrl.u32 2131351028, %v435
      %v442 = vor.u32 %v440, %v441
      %v443 = vshll.u32 2131351028, %v434
      %v444 = vshrl.u32 2102212464, %v435
      %v445 = vor.u32 %v443, %v444
      %v446 = vshll.u32 2102212464, %v434
      %v447 = vshrl.u32 920167782, %v435
      %v448 = vor.u32 %v446, %v447
      %v449 = vshll.u32 920167782, %v434
      %v450 = vshrl.u32 1326507024, %v435
      %v451 = vor.u32 %v449, %v450
      %vm452 = vcmp.lt.s32.totalorder %v433, 1
      %vm453 = vcmp.lt.s32.totalorder %v433, 2
      %vm454 = vcmp.lt.s32.totalorder %v433, 3
      %vm455 = vcmp.lt.s32.totalorder %v433, 4
      %v456 = vsel %vm452, %v436, %v439
      %v457 = vsel %vm455, %v445, 2102212464
      %v458 = vsel %vm454, %v442, %v457
      %v459 = vsel %vm453, %v456, %v458
      %v460 = vsel %vm452, %v439, %v442
      %v461 = vsel %vm455, %v448, 920167782
      %v462 = vsel %vm454, %v445, %v461
      %v463 = vsel %vm453, %v460, %v462
      %v464 = vsel %vm452, %v442, %v445
      %v465 = vsel %vm455, %v451, 1326507024
      %v466 = vsel %vm454, %v448, %v465
      %v467 = vsel %vm453, %v464, %v466
      %v468 = vshll.u32 %v428, 8
      %v469 = vmul.u32.u64.compose %v468, %v467
      %v470 = vextract.low.u32 %v469
      %v471 = vextract.high.u32 %v469
      %v472 = vmul.u32.u64.compose %v468, %v463
      %v473 = vextract.low.u32 %v472
      %v474 = vextract.high.u32 %v472
      %v475 = vmul.u32 %v468, %v459
      %v476 = vadd.s32 %v471, %v473
      %vm477 = vc.u32 %v471, %v473
      %v478 = vadd.s32 %v474, 1
      %v479 = vsel %vm477, %v478, %v474
      %v480 = vadd.s32 %v475, %v479
      %v481 = vadd.s32 %v480, 536870912
      %v482 = vshrl.u32 %v481, 30
      %v483 = vshll.u32 %v482, 30
      %v484 = vsub.s32 %v480, %v483
      %vm485 = vcmp.lt.s32.totalorder %v484, 0
      %v486 = vsub.s32 0, %v484
      %v487 = vsel %vm485, %v486, %v484
      %v488 = vclz %v487
      %v489 = vsub.s32 %v488, 2
      %vm490 = vcmp.gt.s32.totalorder 0, %v489
      %v491 = vsel %vm490, 0, %v489
      %v492 = vsub.s32 32, %v491
      %v493 = vshll.u32 %v484, %v491
      %v494 = vshrl.u32 %v476, %v492
      %v495 = vor.u32 %v493, %v494
      %v496 = vsub.s32 4294967266, %v491
      %v497 = vadd.s32 %v496, 127
      %v498 = vshll.u32 %v497, 23
      %v499 = vor.u32 4788187, %v498
      %v500 = vand.u32 2147483647, %v499
      %v502 = vcvt.s32.f32 %v495
      %v503 = vmul.f32 %v502, %v500
      %v504 = vxor.u32 %v503, 2147483648
      %v505 = vsel %vm422, %v504, %v503
      %v506 = vsub.s32 4, %v482
      %v507 = vsel %vm422, %v506, %v482
      %v508 = vsel %vm421, %v314, %v505
      %v509 = vsel %vm421, 0, %v507
      %v510 = vcosq.f32.pop %v508
      %v511 = vsinq.f32.pop %v508
      %vm512 = vweird.f32 %v314
      %v513 = vadd.s32 %v509, 3
      %v514 = vand.u32 %v513, 3
      %vm515 = vcmp.lt.s32.totalorder %v514, 2
      %vm516 = vcmp.eq.s32.totalorder %v514, 0
      %v517 = vxor.u32 %v511, 2147483648
      %v518 = vsel %vm516, %v510, %v517
      %vm519 = vcmp.eq.s32.totalorder %v514, 2
      %v520 = vxor.u32 %v510, 2147483648
      %v521 = vsel %vm519, %v520, %v511
      %v522 = vsel %vm515, %v518, %v521
      %v523 = vsel %vm512, nan, %v522
      %v524 = vld [vmem:[%s3] sm:$0xff]
      %v525 = vld [vmem:[%s3 + $0x8] sm:$0xff]
      %v526 = vld [vmem:[%s3 + $0x10] sm:$0xff]
      %v527 = vld [vmem:[%s3 + $0x18] sm:$0xff]
      %v528 = vld [vmem:[%s3 + $0x20] sm:$0xff]
      %v529 = vld [vmem:[%s3 + $0x28] sm:$0xff]
      %v530 = vld [vmem:[%s3 + $0x30] sm:$0xff]
      %v531 = vld [vmem:[%s3 + $0x38] sm:$0xff]
      %v532 = vld [vmem:[%s3 + $0x40] sm:$0xff]
      %v533 = vld [vmem:[%s3 + $0x48] sm:$0xff]
      %v534 = vld [vmem:[%s3 + $0x50] sm:$0xff]
      %v535 = vld [vmem:[%s3 + $0x58] sm:$0xff]
      %v536 = vld [vmem:[%s3 + $0x60] sm:$0xff]
      %v537 = vld [vmem:[%s3 + $0x68] sm:$0xff]
      %v538 = vld [vmem:[%s3 + $0x70] sm:$0xff]
      %v539 = vld [vmem:[%s3 + $0x78] sm:$0xff]
      %v540 = vld [vmem:[%s3 + $0x80] sm:$0xff]
      %v541 = vld [vmem:[%s3 + $0x88] sm:$0xff]
      %v542 = vld [vmem:[%s3 + $0x90] sm:$0xff]
      %v543 = vld [vmem:[%s3 + $0x98] sm:$0xff]
      %v544 = vld [vmem:[%s3 + $0xa0] sm:$0xff]
      %v545 = vld [vmem:[%s3 + $0xa8] sm:$0xff]
      %v546 = vld [vmem:[%s3 + $0xb0] sm:$0xff]
      %v547 = vld [vmem:[%s3 + $0xb8] sm:$0xff]
      %v548 = vld [vmem:[%s3 + $0xc0] sm:$0xff]
      %v549 = vld [vmem:[%s3 + $0xc8] sm:$0xff]
      %v550 = vld [vmem:[%s3 + $0xd0] sm:$0xff]
      %v551 = vld [vmem:[%s3 + $0xd8] sm:$0xff]
      %v552 = vld [vmem:[%s3 + $0xe0] sm:$0xff]
      %v553 = vld [vmem:[%s3 + $0xe8] sm:$0xff]
      %v554 = vld [vmem:[%s3 + $0xf0] sm:$0xff]
      %v555 = vld [vmem:[%s3 + $0xf8] sm:$0xff]
      %v556 = vld [vmem:[%s4] sm:$0x1]
      %v558 = vlaneseq
      %v559 = vshrl.u32 %v558, 7
      %v560 = vsub.s32 0, %v559
      %v561 = vrot.slane %v556, %v560
      %563 = vmatprep.subr.mxu0 0.0
      %564 = vmatpush1.msra.mxu0 %v524
      %565 = vmatprep.subr.mxu0 0.0
      %566 = vmatpush1.msra.mxu0 %v525
      %567 = vmatprep.subr.mxu0 0.0
      %568 = vmatpush1.msra.mxu0 %v526
      %569 = vmatprep.subr.mxu0 0.0
      %570 = vmatpush1.msra.mxu0 %v527
      %571 = vmatprep.subr.mxu0 0.0
      %572 = vmatpush1.msra.mxu0 %v528
      %573 = vmatprep.subr.mxu0 0.0
      %574 = vmatpush1.msra.mxu0 %v529
      %575 = vmatprep.subr.mxu0 0.0
      %576 = vmatpush1.msra.mxu0 %v530
      %577 = vmatprep.subr.mxu0 0.0
      %578 = vmatpush1.msra.mxu0 %v531
      %579 = vmatprep.subr.mxu0 0.0
      %580 = vmatpush1.msra.mxu0 %v532
      %581 = vmatprep.subr.mxu0 0.0
      %582 = vmatpush1.msra.mxu0 %v533
      %583 = vmatprep.subr.mxu0 0.0
      %584 = vmatpush1.msra.mxu0 %v534
      %585 = vmatprep.subr.mxu0 0.0
      %586 = vmatpush1.msra.mxu0 %v535
      %587 = vmatprep.subr.mxu0 0.0
      %588 = vmatpush1.msra.mxu0 %v536
      %589 = vmatprep.subr.mxu0 0.0
      %590 = vmatpush1.msra.mxu0 %v537
      %591 = vmatprep.subr.mxu0 0.0
      %592 = vmatpush1.msra.mxu0 %v538
      %593 = vmatprep.subr.mxu0 0.0
      %594 = vmatpush1.msra.mxu0 %v539
      %595 = vmatprep.subr.mxu0 0.0
      %596 = vmatpush1.msra.mxu0 %v540
      %597 = vmatprep.subr.mxu0 0.0
      %598 = vmatpush1.msra.mxu0 %v541
      %599 = vmatprep.subr.mxu0 0.0
      %600 = vmatpush1.msra.mxu0 %v542
      %601 = vmatprep.subr.mxu0 0.0
      %602 = vmatpush1.msra.mxu0 %v543
      %603 = vmatprep.subr.mxu0 0.0
      %604 = vmatpush1.msra.mxu0 %v544
      %605 = vmatprep.subr.mxu0 0.0
      %606 = vmatpush1.msra.mxu0 %v545
      %607 = vmatprep.subr.mxu0 0.0
      %608 = vmatpush1.msra.mxu0 %v546
      %609 = vmatprep.subr.mxu0 0.0
      %610 = vmatpush1.msra.mxu0 %v547
      %611 = vmatprep.subr.mxu0 0.0
      %612 = vmatpush1.msra.mxu0 %v548
      %613 = vmatprep.subr.mxu0 0.0
      %614 = vmatpush1.msra.mxu0 %v549
      %615 = vmatprep.subr.mxu0 0.0
      %616 = vmatpush1.msra.mxu0 %v550
      %617 = vmatprep.subr.mxu0 0.0
      %618 = vmatpush1.msra.mxu0 %v551
      %619 = vmatprep.subr.mxu0 0.0
      %620 = vmatpush1.msra.mxu0 %v552
      %621 = vmatprep.subr.mxu0 0.0
      %622 = vmatpush1.msra.mxu0 %v553
      %623 = vmatprep.subr.mxu0 0.0
      %624 = vmatpush1.msra.mxu0 %v554
      %625 = vmatprep.subr.mxu0 0.0
      %626 = vmatpush1.msra.mxu0 %v555
      %627 = vmatprep.mubr.f32.mxu0 %v523
      %628 = vmatmul.mubr.f32.gmra.mrb[0].mxu0 %v419
      %v629 = vpop.f32.mrb[0].mxu0
      %v630 = vadd.f32 %v561, %v629
      %v631 = vpop.f32.mrb[0].mxu0
      %632 = vdwg.mxu0
      %vm633 = vcmask 64512
      %634 = vst.msk [vmem:[%s219] sm:$0xff] %vm633, %v630
      %p635 = scmp.lt.s32.totalorder %s16, 1
      %s636 = scalar_select %p635, %s16, 1
      %s637 = smul.addr %s636, 8
      %s638 = scalar_lea.vmem %s5, %s637
      // Predicated region
      $region41: #{multi_sinnet_fwd.1} parent=39 // pred_check
        %p639 = pneg %p144
      $region42: #{multi_sinnet_fwd.1} parent=39 // pred_check_branch
        %641 = sbr.rel (%p639) target = $region44
      $region43: #{multi_sinnet_fwd.1} parent=39 // pred_region
        _
      $region44: #{multi_sinnet_fwd.1} parent=39 // pred_fallthru
        _
    $region40: #{multi_sinnet_fwd.1} parent=5 // pred_fallthru
      _
    %p642 = scmp.le.s32.totalorder 2, %s11
    // Predicated region
    $region45: #{multi_sinnet_fwd.1} parent=5 // pred_check
      %p643 = pneg %p642
    $region46: #{multi_sinnet_fwd.1} parent=5 // pred_check_branch
      %645 = sbr.rel (%p643) target = $region48
    $region47: #{multi_sinnet_fwd.1} parent=5 // pred_region
      %s646 = ssub.s32 %s11, 2
      // Predicated region
      $region49: #{multi_sinnet_fwd.1} parent=47 // pred_check
        %p647 = pneg %p150
      $region50: #{multi_sinnet_fwd.1} parent=47 // pred_check_branch
        %649 = sbr.rel (%p647) target = $region52
      $region51: #{multi_sinnet_fwd.1} parent=47 // pred_region
        %p650 = scmp.lt.s32.totalorder %s17, 1
        %s651 = scalar_select %p650, %s17, 1
        %s652 = smul.addr %s651, 8
        %s653 = scalar_lea.vmem %s5, %s652
      $region52: #{multi_sinnet_fwd.1} parent=47 // pred_fallthru
        _
    $region48: #{multi_sinnet_fwd.1} parent=5 // pred_fallthru
      _
  $region6: #{multi_sinnet_fwd.1} parent=0 // loop_footer
    %s15 = sadd.s32 1, %s11
  $region7: #{multi_sinnet_fwd.1} parent=0 // loop_footer_branch
    %10 = sbr.rel target = $region3
  $region8: #{multi_sinnet_fwd.1} parent=0 // loop_exit
    _

</llo_original>
